<compile_context>
chip_gen: v5e
topology: v5e:2x2
jax: 0.10.0
libtpu: 0.0.40
codegen_flags: <defaults>
</compile_context>

<pallas_src>
import jax
import jax.numpy as jnp
from jax import lax
from jax.experimental import pallas as pl
from jax.experimental.pallas import tpu as pltpu

_LANE = 128
_EPS = 1e-5


def _round_up(x, m):
    return (x + m - 1) // m * m


def _conv_stats_kernel(w_ref, p_ref, conv_ref, sum_ref, sq_ref):
    # Pass 1: conv tile (Cout, tile_m) on the MXU, stored lane-dense, plus
    # resident per-channel sum / sum-of-squares accumulators.
    @pl.when(pl.program_id(0) == 0)
    def _():
        sum_ref[...] = jnp.zeros_like(sum_ref)
        sq_ref[...] = jnp.zeros_like(sq_ref)

    conv = jnp.dot(w_ref[...], p_ref[...], preferred_element_type=jnp.float32)
    conv_ref[...] = conv
    sum_ref[...] += jnp.sum(conv, axis=1, keepdims=True)        # (Cout, 1)
    sq_ref[...] += jnp.sum(conv * conv, axis=1, keepdims=True)  # (Cout, 1)


def _bn_relu_kernel(conv_ref, scale_ref, shift_ref, o_ref):
    # Pass 2: pure elementwise y = conv*scale + shift, ReLU. Lane-dense store.
    y = conv_ref[...] * scale_ref[...] + shift_ref[...]
    o_ref[...] = jnp.maximum(y, 0.0).astype(o_ref.dtype)


def _im2col_km(x, ks, stride, padding):
    """x: (N, C, H, W) -> patches (C*ks*ks, N*OH*OW) + (OH, OW).

    K-major layout matches weight.reshape(Cout, Cin*ks*ks) (OIHW flatten).
    """
    n, c, h, w = x.shape
    oh = (h + 2 * padding - ks) // stride + 1
    ow = (w + 2 * padding - ks) // stride + 1
    xp = jnp.pad(x, ((0, 0), (0, 0), (padding, padding), (padding, padding)))
    cols = []
    for ki in range(ks):
        for kj in range(ks):
            cols.append(xp[:, :, ki:ki + stride * oh:stride, kj:kj + stride * ow:stride])
    patches = jnp.stack(cols, axis=2)                 # (N, C, ks*ks, OH, OW)
    patches = patches.transpose(1, 2, 0, 3, 4).reshape(c * ks * ks, n * oh * ow)
    return patches, oh, ow


def conv_block(x, weight, bias, gamma, beta, *, ks, stride=1, padding=0,
               tile_m=1024, compute_dtype=jnp.float32):
    """ConvBlock forward. x: (N, Cin, H, W), weight: (Cout, Cin, ks, ks).

    `bias` is accepted for API parity but unused: a per-channel conv bias is
    exactly cancelled by the train-mode BatchNorm mean subtraction.
    """
    del bias  # cancelled exactly by train-mode BatchNorm mean subtraction
    n, cin, _, _ = x.shape
    cout = weight.shape[0]

    patches, oh, ow = _im2col_km(x, ks, stride, padding)        # (K, M) f32
    k, m = patches.shape

    # Lane-aligned M tiling; no K padding in HBM (Mosaic pads K in VMEM).
    tile_m = min(tile_m, _round_up(m, _LANE))
    m_pad = _round_up(m, tile_m)
    num_tiles = m_pad // tile_m

    p = jnp.pad(patches, ((0, 0), (0, m_pad - m))).astype(compute_dtype)
    w_mat = weight.reshape(cout, k).astype(compute_dtype)        # (Cout, K)

    conv_flops = 2 * cout * k * m_pad
    p_bytes = p.size * p.dtype.itemsize
    w_bytes = w_mat.size * w_mat.dtype.itemsize
    conv_bytes = m_pad * cout * 4

    # ---- Pass 1: conv intermediate + per-channel sum / sum-of-squares ------
    conv_flat, ch_sum, ch_sq = pl.pallas_call(
        _conv_stats_kernel,
        out_shape=(
            jax.ShapeDtypeStruct((cout, m_pad), jnp.float32),    # conv (channel-major)
            jax.ShapeDtypeStruct((cout, 1), jnp.float32),        # sum
            jax.ShapeDtypeStruct((cout, 1), jnp.float32),        # sum of squares
        ),
        grid=(num_tiles,),
        in_specs=[
            pl.BlockSpec((cout, k), lambda i: (0, 0)),           # weights, resident
            pl.BlockSpec((k, tile_m), lambda i: (0, i)),         # patch tile
        ],
        out_specs=(
            pl.BlockSpec((cout, tile_m), lambda i: (0, i)),
            pl.BlockSpec((cout, 1), lambda i: (0, 0)),           # resident accumulator
            pl.BlockSpec((cout, 1), lambda i: (0, 0)),           # resident accumulator
        ),
        compiler_params=pltpu.CompilerParams(
            dimension_semantics=("arbitrary",)),
        cost_estimate=pl.CostEstimate(
            flops=conv_flops + 3 * cout * m_pad,
            transcendentals=0,
            bytes_accessed=p_bytes + w_bytes + conv_bytes + 2 * cout * 4),
    )(w_mat, p)

    # Fold BN (training-mode, biased variance, eps=1e-5) + affine into one
    # per-channel scale/shift (tiny (Cout, 1) math stays in plain JAX, f32).
    inv_m = 1.0 / float(m)                       # zero-padded columns contribute 0
    mean = ch_sum * inv_m                        # (Cout, 1)
    var = jnp.maximum(ch_sq * inv_m - mean * mean, 0.0)
    inv_std = lax.rsqrt(var + _EPS)
    scale = gamma.astype(jnp.float32)[:, None] * inv_std
    shift = beta.astype(jnp.float32)[:, None] - mean * scale

    # ---- Pass 2: elementwise scale/shift + ReLU on the stored conv ---------
    out_flat = pl.pallas_call(
        _bn_relu_kernel,
        out_shape=jax.ShapeDtypeStruct((cout, m_pad), jnp.float32),
        grid=(num_tiles,),
        in_specs=[
            pl.BlockSpec((cout, tile_m), lambda i: (0, i)),
            pl.BlockSpec((cout, 1), lambda i: (0, 0)),
            pl.BlockSpec((cout, 1), lambda i: (0, 0)),
        ],
        out_specs=pl.BlockSpec((cout, tile_m), lambda i: (0, i)),
        compiler_params=pltpu.CompilerParams(
            dimension_semantics=("parallel",)),                  # megacore-shardable
        cost_estimate=pl.CostEstimate(
            flops=3 * cout * m_pad,
            transcendentals=0,
            bytes_accessed=2 * conv_bytes + 4 * cout * 4),
    )(conv_flat, scale, shift)

    # (Cout, M) -> (Cout, N, OH, OW) -> NCHW (cheap axis swap, no lane shuffle).
    return out_flat[:, :m].reshape(cout, n, oh, ow).transpose(1, 0, 2, 3)


def _reference(x, weight, bias, gamma, beta, *, stride, padding):
    conv = lax.conv_general_dilated(
        x, weight, (stride, stride), [(padding, padding), (padding, padding)],
        dimension_numbers=("NCHW", "OIHW", "NCHW"))
    conv = conv + bias[None, :, None, None]
    mu = conv.mean(axis=(0, 2, 3), keepdims=True)
    var = ((conv - mu) ** 2).mean(axis=(0, 2, 3), keepdims=True)
    y = (conv - mu) / jnp.sqrt(var + _EPS)
    y = y * gamma[None, :, None, None] + beta[None, :, None, None]
    return jnp.maximum(y, 0.0)


if __name__ == "__main__":
    # ConvBlock(in_features=4, out_features=8, ks=3, padding=1, stride=1, norm=True, act=True)
    N, CIN, H, W = 2, 4, 16, 16
    COUT, KS, STRIDE, PAD = 8, 3, 1, 1

    key = jax.random.PRNGKey(0)
    kx, kw, kb = jax.random.split(key, 3)
    x = jax.random.normal(kx, (N, CIN, H, W), dtype=jnp.float32)
    weight = 0.1 * jax.random.normal(kw, (COUT, CIN, KS, KS), dtype=jnp.float32)
    bias = 0.1 * jax.random.normal(kb, (COUT,), dtype=jnp.float32)
    gamma = jnp.ones((COUT,), dtype=jnp.float32)
    beta = jnp.zeros((COUT,), dtype=jnp.float32)

    out = conv_block(x, weight, bias, gamma, beta, ks=KS, stride=STRIDE, padding=PAD)
    out = jax.block_until_ready(out)

    ref = _reference(x, weight, bias, gamma, beta, stride=STRIDE, padding=PAD)
    assert out.shape == (N, COUT, H, W), out.shape
    assert jnp.allclose(out, ref, atol=1e-4, rtol=1e-4), float(jnp.abs(out - ref).max())

    print("KERNEL_OK")
</pallas_src>

<mosaic_0001>
module attributes {stable_mosaic.version = 11 : i64} {
  func.func @_conv_stats_kernel(%arg0: i32, %arg1: memref<8x36xf32, #tpu.memory_space<vmem>>, %arg2: memref<36x512xf32, #tpu.memory_space<vmem>>, %arg3: memref<8x512xf32, #tpu.memory_space<vmem>>, %arg4: memref<8x1xf32, #tpu.memory_space<vmem>>, %arg5: memref<8x1xf32, #tpu.memory_space<vmem>>) attributes {dimension_semantics = [#tpu.dimension_semantics<arbitrary>], iteration_bounds = array<i64: 1>, scalar_prefetch = 0 : i64, scratch_operands = 0 : i64, tpu.core_type = #tpu.core_type<tc>, window_params = [{pipeline_mode = #tpu.pipeline_mode<synchronous>, transform_indices = @transform_0, window_bounds = array<i64: 8, 36>}, {transform_indices = @transform_1, window_bounds = array<i64: 36, 512>}, {transform_indices = @transform_2, window_bounds = array<i64: 8, 512>}, {pipeline_mode = #tpu.pipeline_mode<synchronous>, transform_indices = @transform_3, window_bounds = array<i64: 8, 1>}, {pipeline_mode = #tpu.pipeline_mode<synchronous>, transform_indices = @transform_4, window_bounds = array<i64: 8, 1>}]} {
    %c0_i32 = arith.constant 0 : i32
    %0 = arith.cmpi eq, %arg0, %c0_i32 : i32
    %1 = arith.extui %0 : i1 to i32
    %c0_i32_0 = arith.constant 0 : i32
    %2 = arith.cmpi ne, %1, %c0_i32_0 : i32
    scf.if %2 {
      %cst_16 = arith.constant 0.000000e+00 : f32
      %18 = vector.broadcast %cst_16 : f32 to vector<8x1xf32>
      %c0_17 = arith.constant 0 : index
      %c0_18 = arith.constant 0 : index
      %19 = vector.load %arg4[%c0_17, %c0_18] : memref<8x1xf32, #tpu.memory_space<vmem>>, vector<8x1xf32>
      tpu.vector_store %arg4[%c0_17, %c0_18], %18 {strides = array<i32>} : memref<8x1xf32, #tpu.memory_space<vmem>>, vector<8x1xf32>,
      %cst_19 = arith.constant 0.000000e+00 : f32
      %20 = vector.broadcast %cst_19 : f32 to vector<8x1xf32>
      %c0_20 = arith.constant 0 : index
      %c0_21 = arith.constant 0 : index
      %21 = vector.load %arg5[%c0_20, %c0_21] : memref<8x1xf32, #tpu.memory_space<vmem>>, vector<8x1xf32>
      tpu.vector_store %arg5[%c0_20, %c0_21], %20 {strides = array<i32>} : memref<8x1xf32, #tpu.memory_space<vmem>>, vector<8x1xf32>,
    } else {
    }
    %c0 = arith.constant 0 : index
    %c0_1 = arith.constant 0 : index
    %3 = vector.load %arg1[%c0, %c0_1] : memref<8x36xf32, #tpu.memory_space<vmem>>, vector<8x36xf32>
    %c0_2 = arith.constant 0 : index
    %c0_3 = arith.constant 0 : index
    %4 = vector.load %arg2[%c0_2, %c0_3] : memref<36x512xf32, #tpu.memory_space<vmem>>, vector<36x512xf32>
    %cst = arith.constant dense<0.000000e+00> : vector<8x512xf32>
    %5 = tpu.matmul %3, %4, %cst {dimension_numbers = #tpu.dot_dimension_numbers<[1], [0], [0], [1], [0, 0, 1, 1], [], []>} : vector<8x36xf32>, vector<36x512xf32>, vector<8x512xf32> -> vector<8x512xf32>
    %c0_4 = arith.constant 0 : index
    %c0_5 = arith.constant 0 : index
    %6 = vector.load %arg3[%c0_4, %c0_5] : memref<8x512xf32, #tpu.memory_space<vmem>>, vector<8x512xf32>
    tpu.vector_store %arg3[%c0_4, %c0_5], %5 {strides = array<i32>} : memref<8x512xf32, #tpu.memory_space<vmem>>, vector<8x512xf32>,
    %c0_6 = arith.constant 0 : index
    %c0_7 = arith.constant 0 : index
    %7 = vector.load %arg4[%c0_6, %c0_7] : memref<8x1xf32, #tpu.memory_space<vmem>>, vector<8x1xf32>
    %cst_8 = arith.constant dense<0.000000e+00> : vector<8xf32>
    %8 = vector.multi_reduction <add>, %5, %cst_8 [1] : vector<8x512xf32> to vector<8xf32>
    %9 = vector.shape_cast %8 : vector<8xf32> to vector<8x1xf32>
    %10 = arith.addf %7, %9 : vector<8x1xf32>
    %c0_9 = arith.constant 0 : index
    %c0_10 = arith.constant 0 : index
    %11 = vector.load %arg4[%c0_9, %c0_10] : memref<8x1xf32, #tpu.memory_space<vmem>>, vector<8x1xf32>
    tpu.vector_store %arg4[%c0_9, %c0_10], %10 {strides = array<i32>} : memref<8x1xf32, #tpu.memory_space<vmem>>, vector<8x1xf32>,
    %c0_11 = arith.constant 0 : index
    %c0_12 = arith.constant 0 : index
    %12 = vector.load %arg5[%c0_11, %c0_12] : memref<8x1xf32, #tpu.memory_space<vmem>>, vector<8x1xf32>
    %13 = arith.mulf %5, %5 : vector<8x512xf32>
    %cst_13 = arith.constant dense<0.000000e+00> : vector<8xf32>
    %14 = vector.multi_reduction <add>, %13, %cst_13 [1] : vector<8x512xf32> to vector<8xf32>
    %15 = vector.shape_cast %14 : vector<8xf32> to vector<8x1xf32>
    %16 = arith.addf %12, %15 : vector<8x1xf32>
    %c0_14 = arith.constant 0 : index
    %c0_15 = arith.constant 0 : index
    %17 = vector.load %arg5[%c0_14, %c0_15] : memref<8x1xf32, #tpu.memory_space<vmem>>, vector<8x1xf32>
    tpu.vector_store %arg5[%c0_14, %c0_15], %16 {strides = array<i32>} : memref<8x1xf32, #tpu.memory_space<vmem>>, vector<8x1xf32>,
    return
  }
  func.func @transform_0(%arg0: i32) -> (i32, i32) {
    %c0_i32 = arith.constant 0 : i32
    %c0_i32_0 = arith.constant 0 : i32
    %c0_i32_1 = arith.constant 0 : i32
    return %c0_i32, %c0_i32_0 : i32, i32
  }
  func.func @transform_1(%arg0: i32) -> (i32, i32) {
    %c0_i32 = arith.constant 0 : i32
    %c0_i32_0 = arith.constant 0 : i32
    return %c0_i32, %arg0 : i32, i32
  }
  func.func @transform_2(%arg0: i32) -> (i32, i32) {
    %c0_i32 = arith.constant 0 : i32
    %c0_i32_0 = arith.constant 0 : i32
    return %c0_i32, %arg0 : i32, i32
  }
  func.func @transform_3(%arg0: i32) -> (i32, i32) {
    %c0_i32 = arith.constant 0 : i32
    %c0_i32_0 = arith.constant 0 : i32
    %c0_i32_1 = arith.constant 0 : i32
    return %c0_i32, %c0_i32_0 : i32, i32
  }
  func.func @transform_4(%arg0: i32) -> (i32, i32) {
    %c0_i32 = arith.constant 0 : i32
    %c0_i32_0 = arith.constant 0 : i32
    %c0_i32_1 = arith.constant 0 : i32
    return %c0_i32, %c0_i32_0 : i32, i32
  }
}

</mosaic_0001>

<llo_original>
// kernel: tpu_custom_call.1
$region0: #{tpu_custom_call.1}
  #allocation0 [shape = 'u32[]', space=smem, size = 0x4, offset = 0x4, fixed_abs, tag = 'smem constant byte address 0x4 - core index']
  #allocation1 [shape = 'u32[72,128]{1,0:T(1,128)}', space=vmem, size = 0x9000, scoped, tag = 'internal scratch']
  %s0 = inlined_call_operand.hbm [shape: f32[8,36], index: 0, kind: input, shape index: {}]
  %s1 = inlined_call_operand.hbm [shape: f32[36,512], index: 1, kind: input, shape index: {}]
  %s2 = inlined_call_operand.hbm [shape: f32[8,512], index: 2, kind: output, shape index: {0}]
  %s3 = inlined_call_operand.vmem [shape: f32[8,1], index: 3, kind: output, shape index: {1}]
  %s4 = inlined_call_operand.vmem [shape: f32[8,1], index: 4, kind: output, shape index: {2}]
  %5 = xla_tuple %s2, %s3, %s4
  %s6 = sld [smem:[#allocation0]]
  $region46: #{tpu_custom_call.1} parent=0
    _
  %s8 = ssub.s32 1, %s6
  %s9 = scalar_select 0, %s8, %s6
  $region1: #{tpu_custom_call.1} parent=0
    #allocation2 [shape = 'u8[4096]{0}', space=vmem, size = 0x1000, scoped, tag = 'input window, operand 0, single buffered']
    #allocation3 [shape = 's32[1]{0}', space=sflag, size = 0x4, scoped, tag = 'scoped memory for tpu_custom_call.1']
    #allocation4 [shape = 's32[1]{0}', space=sflag, size = 0x4, scoped, tag = 'scoped memory for tpu_custom_call.1']
    #allocation5 [shape = 'u8[81920]{0}', space=vmem, size = 0x14000, scoped, tag = 'input window, operand 1, single buffered']
    #allocation6 [shape = 's32[1]{0}', space=sflag, size = 0x4, scoped, tag = 'scoped memory for tpu_custom_call.1']
    #allocation7 [shape = 'u8[16384]{0}', space=vmem, size = 0x4000, scoped, tag = 'output window, operand 0, single buffered']
    %10 = vsyncpa [#allocation3], 0
    %11 = vsyncpa [#allocation6], 0
    %12 = vsyncpa [#allocation4], 0
    // Predicated region
    $region2: #{tpu_custom_call.1} parent=1 // pred_check
      _
    $region3: #{tpu_custom_call.1} parent=1 // pred_check_branch
      %14 = sbr.rel (0) target = $region5
    $region4: #{tpu_custom_call.1} parent=1 // pred_region
      %16 = vsyncadd [#allocation3], 0
      %s18 = sshll.u32 %s0, 4
      %s19 = int_to_ptr.hbm [resolvable:$true] %s18
      %s20 = sshll.u32 [#allocation2], 4
      %s21 = int_to_ptr.vmem [resolvable:$true] %s20
      %23 = dma.hbm_to_vmem [thread:$0]  %s19, 128, %s21, [#allocation3]
    $region5: #{tpu_custom_call.1} parent=1 // pred_fallthru
      _
    // Predicated region
    $region6: #{tpu_custom_call.1} parent=1 // pred_check
      _
    $region7: #{tpu_custom_call.1} parent=1 // pred_check_branch
      %25 = sbr.rel (0) target = $region9
    $region8: #{tpu_custom_call.1} parent=1 // pred_region
      %27 = vsyncadd [#allocation6], 0
      %s28 = sshll.u32 %s1, 4
      %s29 = int_to_ptr.hbm [resolvable:$true] %s28
      %s30 = sshll.u32 [#allocation5], 4
      %s31 = int_to_ptr.vmem [resolvable:$true] %s30
      %36 = dma.hbm_to_vmem [thread:$0]  %s29, 2560, %s31, [#allocation6], 512, 512, 32
    $region9: #{tpu_custom_call.1} parent=1 // pred_fallthru
      _
    // Predicated region
    $region10: #{tpu_custom_call.1} parent=1 // pred_check
      _
    $region11: #{tpu_custom_call.1} parent=1 // pred_check_branch
      %38 = sbr.rel (0) target = $region13
    $region12: #{tpu_custom_call.1} parent=1 // pred_region
      %40 = dma.done [#allocation3], 128
    $region13: #{tpu_custom_call.1} parent=1 // pred_fallthru
      _
    // Predicated region
    $region14: #{tpu_custom_call.1} parent=1 // pred_check
      _
    $region15: #{tpu_custom_call.1} parent=1 // pred_check_branch
      %42 = sbr.rel (0) target = $region17
    $region16: #{tpu_custom_call.1} parent=1 // pred_region
      %44 = dma.done [#allocation6], 2560
    $region17: #{tpu_custom_call.1} parent=1 // pred_fallthru
      _
    %p45 = scmp.eq.s32.totalorder 0, 0
    // Predicated region
    $region18: #{tpu_custom_call.1} parent=1 // pred_check
      %p46 = pneg %p45
    $region19: #{tpu_custom_call.1} parent=1 // pred_check_branch
      %48 = sbr.rel (%p46) target = $region21
    $region20: #{tpu_custom_call.1} parent=1 // pred_region
      %vm49 = vcmask 7168
      %50 = vst.msk [vmem:[%s3] sm:$0xff] %vm49, 0.0
      %51 = vst.msk [vmem:[%s4] sm:$0xff] %vm49, 0.0
    $region21: #{tpu_custom_call.1} parent=1 // pred_fallthru
      _
    %v52 = vld [vmem:[#allocation2] sm:$0xff]
    %v53 = vld [vmem:[#allocation5] sm:$0xff]
    %v54 = vld [vmem:[#allocation5 + $0x8] sm:$0xff]
    %v55 = vld [vmem:[#allocation5 + $0x10] sm:$0xff]
    %v56 = vld [vmem:[#allocation5 + $0x18] sm:$0xff]
    %v57 = vld [vmem:[#allocation5 + $0x20] sm:$0xff]
    %v58 = vld [vmem:[#allocation5 + $0x28] sm:$0xff]
    %v59 = vld [vmem:[#allocation5 + $0x30] sm:$0xff]
    %v60 = vld [vmem:[#allocation5 + $0x38] sm:$0xff]
    %v61 = vld [vmem:[#allocation5 + $0x40] sm:$0xff]
    %v62 = vld [vmem:[#allocation5 + $0x48] sm:$0xff]
    %v63 = vld [vmem:[#allocation5 + $0x50] sm:$0xff]
    %v64 = vld [vmem:[#allocation5 + $0x58] sm:$0xff]
    %v65 = vld [vmem:[#allocation5 + $0x60] sm:$0xff]
    %v66 = vld [vmem:[#allocation5 + $0x68] sm:$0xff]
    %v67 = vld [vmem:[#allocation5 + $0x70] sm:$0xff]
    %v68 = vld [vmem:[#allocation5 + $0x78] sm:$0xff]
    %v69 = vld [vmem:[#allocation5 + $0x80] sm:$0xf]
    %v70 = vld [vmem:[#allocation5 + $0x88] sm:$0xf]
    %v71 = vld [vmem:[#allocation5 + $0x90] sm:$0xf]
    %v72 = vld [vmem:[#allocation5 + $0x98] sm:$0xf]
    %vm73 = vcmask 293888
    %v75 = vsel %vm73, %v52, 0
    %vm77 = vcmask 1043456
    %v79 = vsel %vm77, %v69, 0
    %v82 = vsel %vm77, %v70, 0
    %v85 = vsel %vm77, %v71, 0
    %v88 = vsel %vm77, %v72, 0
    %90 = vmatpush.msra.mxu0 0.0
    %91 = vmatpush.msra.mxu0 0.0
    %92 = vmatpush.msra.mxu0 0.0
    %93 = vmatpush.msra.mxu0 0.0
    %94 = vmatpush.msra.mxu0 0.0
    %95 = vmatpush.msra.mxu0 0.0
    %96 = vmatpush.msra.mxu0 0.0
    %97 = vmatpush.msra.mxu0 0.0
    %98 = vmatpush.msra.mxu0 0.0
    %99 = vmatpush.msra.mxu0 0.0
    %100 = vmatpush.msra.mxu0 0.0
    %101 = vmatpush.msra.mxu0 %v79
    %102 = vmatpush.msra.mxu0 %v65
    %103 = vmatpush.msra.mxu0 %v61
    %104 = vmatpush.msra.mxu0 %v57
    %105 = vmatpush.msra.mxu0 %v53
    %106 = vmatmul.f32.gmra.mxu0 %v75
    %v107 = vpop.f32.mrf.mxu0
    %v108 = vadd.f32 0.0, %v107
    %109 = vdwg.mxu0
    %110 = vmatpush.msra.mxu0 0.0
    %111 = vmatpush.msra.mxu0 0.0
    %112 = vmatpush.msra.mxu0 0.0
    %113 = vmatpush.msra.mxu0 0.0
    %114 = vmatpush.msra.mxu0 0.0
    %115 = vmatpush.msra.mxu0 0.0
    %116 = vmatpush.msra.mxu0 0.0
    %117 = vmatpush.msra.mxu0 0.0
    %118 = vmatpush.msra.mxu0 0.0
    %119 = vmatpush.msra.mxu0 0.0
    %120 = vmatpush.msra.mxu0 0.0
    %121 = vmatpush.msra.mxu0 %v82
    %122 = vmatpush.msra.mxu0 %v66
    %123 = vmatpush.msra.mxu0 %v62
    %124 = vmatpush.msra.mxu0 %v58
    %125 = vmatpush.msra.mxu0 %v54
    %126 = vmatmul.f32.gmra.mxu0 %v75
    %v127 = vpop.f32.mrf.mxu0
    %v128 = vadd.f32 0.0, %v127
    %129 = vdwg.mxu0
    %130 = vmatpush.msra.mxu0 0.0
    %131 = vmatpush.msra.mxu0 0.0
    %132 = vmatpush.msra.mxu0 0.0
    %133 = vmatpush.msra.mxu0 0.0
    %134 = vmatpush.msra.mxu0 0.0
    %135 = vmatpush.msra.mxu0 0.0
    %136 = vmatpush.msra.mxu0 0.0
    %137 = vmatpush.msra.mxu0 0.0
    %138 = vmatpush.msra.mxu0 0.0
    %139 = vmatpush.msra.mxu0 0.0
    %140 = vmatpush.msra.mxu0 0.0
    %141 = vmatpush.msra.mxu0 %v85
    %142 = vmatpush.msra.mxu0 %v67
    %143 = vmatpush.msra.mxu0 %v63
    %144 = vmatpush.msra.mxu0 %v59
    %145 = vmatpush.msra.mxu0 %v55
    %146 = vmatmul.f32.gmra.mxu0 %v75
    %v147 = vpop.f32.mrf.mxu0
    %v148 = vadd.f32 0.0, %v147
    %149 = vdwg.mxu0
    %150 = vmatpush.msra.mxu0 0.0
    %151 = vmatpush.msra.mxu0 0.0
    %152 = vmatpush.msra.mxu0 0.0
    %153 = vmatpush.msra.mxu0 0.0
    %154 = vmatpush.msra.mxu0 0.0
    %155 = vmatpush.msra.mxu0 0.0
    %156 = vmatpush.msra.mxu0 0.0
    %157 = vmatpush.msra.mxu0 0.0
    %158 = vmatpush.msra.mxu0 0.0
    %159 = vmatpush.msra.mxu0 0.0
    %160 = vmatpush.msra.mxu0 0.0
    %161 = vmatpush.msra.mxu0 %v88
    %162 = vmatpush.msra.mxu0 %v68
    %163 = vmatpush.msra.mxu0 %v64
    %164 = vmatpush.msra.mxu0 %v60
    %165 = vmatpush.msra.mxu0 %v56
    %166 = vmatmul.f32.gmra.mxu0 %v75
    %v167 = vpop.f32.mrf.mxu0
    %v168 = vadd.f32 0.0, %v167
    %169 = vdwg.mxu0
    %170 = vst [vmem:[#allocation7] sm:$0xff] %v108
    %171 = vst [vmem:[#allocation7 + $0x8] sm:$0xff] %v128
    %172 = vst [vmem:[#allocation7 + $0x10] sm:$0xff] %v148
    %173 = vst [vmem:[#allocation7 + $0x18] sm:$0xff] %v168
    %v174 = vld [vmem:[%s3] sm:$0xff]
    %v175 = vadd.f32 %v108, %v128
    %v176 = vadd.f32 %v175, %v148
    %v177 = vadd.f32 %v176, %v168
    %178 = vadd.xlane.f32.xlu0 %v177
    %v179 = vpop.xlane.xlu0 %178
    %v180 = vadd.f32 %v174, %v179
    %vm181 = vcmask 7168
    %182 = vst.msk [vmem:[%s3] sm:$0xff] %vm181, %v180
    %v183 = vld [vmem:[%s4] sm:$0xff]
    %v184 = vmul.f32 %v108, %v108
    %v185 = vmul.f32 %v128, %v128
    %v186 = vmul.f32 %v148, %v148
    %v187 = vmul.f32 %v168, %v168
    %v188 = vadd.f32 %v184, %v185
    %v189 = vadd.f32 %v188, %v186
    %v190 = vadd.f32 %v189, %v187
    %191 = vadd.xlane.f32.xlu0 %v190
    %v192 = vpop.xlane.xlu0 %191
    %v193 = vadd.f32 %v183, %v192
    %194 = vst.msk [vmem:[%s4] sm:$0xff] %vm181, %v193
    // Predicated region
    $region22: #{tpu_custom_call.1} parent=1 // pred_check
      _
    $region23: #{tpu_custom_call.1} parent=1 // pred_check_branch
      %196 = sbr.rel (0) target = $region25
    $region24: #{tpu_custom_call.1} parent=1 // pred_region
      %198 = vsyncadd [#allocation4], 0
      %s200 = sshll.u32 [#allocation7], 4
      %s201 = int_to_ptr.vmem [resolvable:$true] %s200
      %s202 = sshll.u32 %s2, 4
      %s203 = int_to_ptr.hbm [resolvable:$true] %s202
      %205 = dma.vmem_to_hbm [thread:$0]  %s201, 512, %s203, [#allocation4]
    $region25: #{tpu_custom_call.1} parent=1 // pred_fallthru
      _
    // Predicated region
    $region26: #{tpu_custom_call.1} parent=1 // pred_check
      _
    $region27: #{tpu_custom_call.1} parent=1 // pred_check_branch
      %207 = sbr.rel (0) target = $region29
    $region28: #{tpu_custom_call.1} parent=1 // pred_region
      _
    $region29: #{tpu_custom_call.1} parent=1 // pred_fallthru
      _
    // Predicated region
    $region30: #{tpu_custom_call.1} parent=1 // pred_check
      _
    $region31: #{tpu_custom_call.1} parent=1 // pred_check_branch
      %209 = sbr.rel (0) target = $region33
    $region32: #{tpu_custom_call.1} parent=1 // pred_region
      _
    $region33: #{tpu_custom_call.1} parent=1 // pred_fallthru
      _
    // Predicated region
    $region34: #{tpu_custom_call.1} parent=1 // pred_check
      _
    $region35: #{tpu_custom_call.1} parent=1 // pred_check_branch
      %211 = sbr.rel (0) target = $region37
    $region36: #{tpu_custom_call.1} parent=1 // pred_region
      %213 = dma.done [#allocation4], 512
    $region37: #{tpu_custom_call.1} parent=1 // pred_fallthru
      _
    // Predicated region
    $region38: #{tpu_custom_call.1} parent=1 // pred_check
      _
    $region39: #{tpu_custom_call.1} parent=1 // pred_check_branch
      %215 = sbr.rel (0) target = $region41
    $region40: #{tpu_custom_call.1} parent=1 // pred_region
      _
    $region41: #{tpu_custom_call.1} parent=1 // pred_fallthru
      _
    // Predicated region
    $region42: #{tpu_custom_call.1} parent=1 // pred_check
      _
    $region43: #{tpu_custom_call.1} parent=1 // pred_check_branch
      %217 = sbr.rel (0) target = $region45
    $region44: #{tpu_custom_call.1} parent=1 // pred_region
      _
    $region45: #{tpu_custom_call.1} parent=1 // pred_fallthru
      _
    %218 = vsyncpa [#allocation3], 1
    %219 = vsyncpa [#allocation6], 1
    %220 = vsyncpa [#allocation4], 1

</llo_original>
